<compile_context>
chip_gen: v7x
topology: tpu7x:2x2x1
jax: 0.10.0
libtpu: 0.0.40
codegen_flags: <defaults>
</compile_context>

<pallas_src>
import jax
import jax.numpy as jnp
from jax.experimental import pallas as pl
from jax.experimental.pallas import tpu as pltpu

EPS = 1e-5

_FOLDED_ORDER = ("w1", "b1", "w2", "b2", "w3", "b3", "w4", "b4")


def _round_up(n, m):
    return ((n + m - 1) // m) * m


def _mlp_kernel(x_ref, w1, b1, w2, b2, w3, b3, w4, b4, o_ref):
    # BN (eval) affines already folded into w2/b2, w3/b3, w4/b4 on the host.
    # x arrives as bf16 (single cast in the wrapper); weights are bf16,
    # accumulation is f32 on the MXU; bias/ReLU stay f32 (v5e-safe).
    x = x_ref[...]

    h = jnp.dot(x, w1[...], preferred_element_type=jnp.float32) + b1[...]
    h = jnp.maximum(h, 0.0)

    h = jnp.dot(h.astype(jnp.bfloat16), w2[...],
                preferred_element_type=jnp.float32) + b2[...]
    h = jnp.maximum(h, 0.0)

    h = jnp.dot(h.astype(jnp.bfloat16), w3[...],
                preferred_element_type=jnp.float32) + b3[...]
    h = jnp.maximum(h, 0.0)

    out = jnp.dot(h.astype(jnp.bfloat16), w4[...],
                  preferred_element_type=jnp.float32) + b4[...]
    # Exact sigmoid: the (block_b, 32) tail tile is tiny, so the VPU divide is
    # negligible and avoids the ~1e-3 error of the approximate reciprocal.
    o_ref[...] = (1.0 / (1.0 + jnp.exp(-out))).astype(o_ref.dtype)


def fold_bn_params(params):
    """Fold eval-mode BatchNorm affines into the following Linear layer (exact, f32)."""
    folded = {"w1": params["w1"].astype(jnp.float32),
              "b1": params["b1"].astype(jnp.float32)}
    for li in (1, 2, 3):
        s = params[f"g{li}"] * jax.lax.rsqrt(params[f"v{li}"] + EPS)   # [1, F]
        t = params[f"be{li}"] - params[f"m{li}"] * s                   # [1, F]
        w_next = params[f"w{li + 1}"].astype(jnp.float32)              # [F, F']
        b_next = params[f"b{li + 1}"].astype(jnp.float32)              # [1, F']
        folded[f"w{li + 1}"] = w_next * s.T                            # diag(s) @ W
        folded[f"b{li + 1}"] = b_next + t @ w_next
    return folded


def entrance_prediction_forward(x, params, *, block_b=None, block_b_cap=2048):
    B, D_in = x.shape
    folded = fold_bn_params(params)
    D_out = folded["w4"].shape[1]

    # Weights -> bf16 (single-pass MXU operands); biases stay f32.
    param_vals = [folded[k].astype(jnp.bfloat16) if k.startswith("w") else folded[k]
                  for k in _FOLDED_ORDER]

    # Batch tiling: multiple-of-16 sublane tiles (bf16 packing). Default aims
    # for a grid length >= 2 (keeps both v7x TensorCores busy) while capping
    # the tile so per-step VMEM stays ~8-10 MiB (safe on v5e too).
    # On v6e/v7x block_b_cap may be raised to 4096.
    if block_b is None:
        B16 = _round_up(B, 16)
        block_b = min(block_b_cap, _round_up(pl.cdiv(B16, 2), 16))
    block_b = max(16, _round_up(block_b, 16))

    B_pad = _round_up(B, block_b)
    x_in = x.astype(jnp.bfloat16)          # streaming input: bf16 halves DMA bytes
    if B_pad != B:
        x_in = jnp.pad(x_in, ((0, B_pad - B), (0, 0)))

    grid = (B_pad // block_b,)

    in_specs = [pl.BlockSpec((block_b, D_in), lambda i: (i, 0))]
    # Parameters are small (<200 KiB total): fully VMEM-resident, constant
    # block index across the grid (no re-DMA per step).
    in_specs += [pl.BlockSpec(p.shape, lambda i: (0, 0)) for p in param_vals]
    out_spec = pl.BlockSpec((block_b, D_out), lambda i: (i, 0))

    out = pl.pallas_call(
        _mlp_kernel,
        out_shape=jax.ShapeDtypeStruct((B_pad, D_out), jnp.float32),
        grid_spec=pltpu.PrefetchScalarGridSpec(
            num_scalar_prefetch=0,
            grid=grid,
            in_specs=in_specs,
            out_specs=out_spec,
        ),
        compiler_params=pltpu.CompilerParams(
            dimension_semantics=("parallel",),
            vmem_limit_bytes=32 * 1024 * 1024),
    )(x_in, *param_vals)

    return out[:B] if B_pad != B else out


def init_params(key, input_dim=64, hidden_dim=128, output_dim=32):
    """Deterministic synthetic parameter init (shapes from the PyTorch module)."""
    dims = [(input_dim, hidden_dim),
            (hidden_dim, hidden_dim * 2),
            (hidden_dim * 2, hidden_dim),
            (hidden_dim, output_dim)]
    keys = jax.random.split(key, 32)
    ki = iter(range(32))
    params = {}
    for li, (din, dout) in enumerate(dims, start=1):
        scale = 1.0 / jnp.sqrt(jnp.float32(din))
        params[f"w{li}"] = scale * jax.random.normal(
            keys[next(ki)], (din, dout), jnp.float32)
        params[f"b{li}"] = 0.1 * jax.random.normal(
            keys[next(ki)], (1, dout), jnp.float32)
        if li <= 3:  # BatchNorm1d after the first three Linear layers
            params[f"g{li}"] = 1.0 + 0.1 * jax.random.normal(
                keys[next(ki)], (1, dout), jnp.float32)
            params[f"be{li}"] = 0.1 * jax.random.normal(
                keys[next(ki)], (1, dout), jnp.float32)
            params[f"m{li}"] = 0.05 * jax.random.normal(
                keys[next(ki)], (1, dout), jnp.float32)
            params[f"v{li}"] = 1.0 + 0.1 * jax.nn.softplus(
                jax.random.normal(keys[next(ki)], (1, dout), jnp.float32))
    return params


def reference_forward(x, params):
    """Pure-JAX f32 reference (eval-mode PyTorch semantics, unfolded BN)."""
    h = x
    for li in (1, 2, 3):
        h = h @ params[f"w{li}"] + params[f"b{li}"]
        h = jnp.maximum(h, 0.0)
        h = ((h - params[f"m{li}"]) * jax.lax.rsqrt(params[f"v{li}"] + EPS)
             * params[f"g{li}"] + params[f"be{li}"])
    out = h @ params["w4"] + params["b4"]
    return jax.nn.sigmoid(out)


def reference_forward_folded_bf16(x, params):
    """Same BN folding + bf16 matmul operands as the kernel (tight-tolerance ref)."""
    folded = fold_bn_params(params)
    h = x.astype(jnp.bfloat16)
    for li in (1, 2, 3):
        h = jnp.dot(h, folded[f"w{li}"].astype(jnp.bfloat16),
                    preferred_element_type=jnp.float32) + folded[f"b{li}"]
        h = jnp.maximum(h, 0.0).astype(jnp.bfloat16)
    out = jnp.dot(h, folded["w4"].astype(jnp.bfloat16),
                  preferred_element_type=jnp.float32) + folded["b4"]
    return jax.nn.sigmoid(out)


if __name__ == "__main__":
    key = jax.random.PRNGKey(0)
    k_x, k_p, k_x2 = jax.random.split(key, 3)

    B, D_IN, D_HID, D_OUT = 16, 64, 128, 32
    params = init_params(k_p, D_IN, D_HID, D_OUT)

    # Case 1: small single-tile batch (default tiling).
    x = jax.random.normal(k_x, (B, D_IN), jnp.float32)
    out = jax.block_until_ready(entrance_prediction_forward(x, params))
    assert out.shape == (B, D_OUT)
    ref_tight = jax.block_until_ready(reference_forward_folded_bf16(x, params))
    ref_f32 = jax.block_until_ready(reference_forward(x, params))
    assert jnp.allclose(out, ref_tight, atol=5e-3, rtol=5e-3), "mismatch vs bf16 reference"
    assert jnp.allclose(out, ref_f32, atol=5e-2, rtol=5e-2), "mismatch vs f32 reference"

    # Case 2: ragged batch with an explicit small tile (exercises padding +
    # multi-step parallel grid + bf16 16-row sublane tiling).
    B2 = 40
    x2 = jax.random.normal(k_x2, (B2, D_IN), jnp.float32)
    out2 = jax.block_until_ready(entrance_prediction_forward(x2, params, block_b=16))
    assert out2.shape == (B2, D_OUT)
    ref2 = jax.block_until_ready(reference_forward_folded_bf16(x2, params))
    assert jnp.allclose(out2, ref2, atol=5e-3, rtol=5e-3), "mismatch vs bf16 reference (ragged)"

    print("KERNEL_OK")
</pallas_src>

<mosaic_0001>
module attributes {stable_mosaic.version = 11 : i64} {
  func.func @_mlp_kernel(%arg0: i32, %arg1: memref<16x64xbf16, #tpu.memory_space<vmem>>, %arg2: memref<64x128xbf16, #tpu.memory_space<vmem>>, %arg3: memref<1x128xf32, #tpu.memory_space<vmem>>, %arg4: memref<128x256xbf16, #tpu.memory_space<vmem>>, %arg5: memref<1x256xf32, #tpu.memory_space<vmem>>, %arg6: memref<256x128xbf16, #tpu.memory_space<vmem>>, %arg7: memref<1x128xf32, #tpu.memory_space<vmem>>, %arg8: memref<128x32xbf16, #tpu.memory_space<vmem>>, %arg9: memref<1x32xf32, #tpu.memory_space<vmem>>, %arg10: memref<16x32xf32, #tpu.memory_space<vmem>>) attributes {dimension_semantics = [#tpu.dimension_semantics<parallel>], iteration_bounds = array<i64: 1>, scalar_prefetch = 0 : i64, scratch_operands = 0 : i64, tpu.core_type = #tpu.core_type<tc>, window_params = [{transform_indices = @transform_0, window_bounds = array<i64: 16, 64>}, {pipeline_mode = #tpu.pipeline_mode<synchronous>, transform_indices = @transform_1, window_bounds = array<i64: 64, 128>}, {pipeline_mode = #tpu.pipeline_mode<synchronous>, transform_indices = @transform_2, window_bounds = array<i64: 1, 128>}, {pipeline_mode = #tpu.pipeline_mode<synchronous>, transform_indices = @transform_3, window_bounds = array<i64: 128, 256>}, {pipeline_mode = #tpu.pipeline_mode<synchronous>, transform_indices = @transform_4, window_bounds = array<i64: 1, 256>}, {pipeline_mode = #tpu.pipeline_mode<synchronous>, transform_indices = @transform_5, window_bounds = array<i64: 256, 128>}, {pipeline_mode = #tpu.pipeline_mode<synchronous>, transform_indices = @transform_6, window_bounds = array<i64: 1, 128>}, {pipeline_mode = #tpu.pipeline_mode<synchronous>, transform_indices = @transform_7, window_bounds = array<i64: 128, 32>}, {pipeline_mode = #tpu.pipeline_mode<synchronous>, transform_indices = @transform_8, window_bounds = array<i64: 1, 32>}, {transform_indices = @transform_9, window_bounds = array<i64: 16, 32>}]} {
    %c0 = arith.constant 0 : index
    %c0_0 = arith.constant 0 : index
    %0 = vector.load %arg1[%c0, %c0_0] : memref<16x64xbf16, #tpu.memory_space<vmem>>, vector<16x64xbf16>
    %c0_1 = arith.constant 0 : index
    %c0_2 = arith.constant 0 : index
    %1 = vector.load %arg2[%c0_1, %c0_2] : memref<64x128xbf16, #tpu.memory_space<vmem>>, vector<64x128xbf16>
    %cst = arith.constant dense<0.000000e+00> : vector<16x128xf32>
    %2 = tpu.matmul %0, %1, %cst {dimension_numbers = #tpu.dot_dimension_numbers<[1], [0], [0], [1], [0, 0, 1, 1], [], []>} : vector<16x64xbf16>, vector<64x128xbf16>, vector<16x128xf32> -> vector<16x128xf32>
    %c0_3 = arith.constant 0 : index
    %c0_4 = arith.constant 0 : index
    %3 = vector.load %arg3[%c0_3, %c0_4] : memref<1x128xf32, #tpu.memory_space<vmem>>, vector<1x128xf32>
    %4 = vector.broadcast %3 : vector<1x128xf32> to vector<16x128xf32>
    %5 = arith.addf %2, %4 : vector<16x128xf32>
    %cst_5 = arith.constant 0.000000e+00 : f32
    %6 = vector.broadcast %cst_5 : f32 to vector<16x128xf32>
    %7 = arith.maximumf %5, %6 : vector<16x128xf32>
    %8 = arith.truncf %7 : vector<16x128xf32> to vector<16x128xbf16>
    %c0_6 = arith.constant 0 : index
    %c0_7 = arith.constant 0 : index
    %9 = vector.load %arg4[%c0_6, %c0_7] : memref<128x256xbf16, #tpu.memory_space<vmem>>, vector<128x256xbf16>
    %cst_8 = arith.constant dense<0.000000e+00> : vector<16x256xf32>
    %10 = tpu.matmul %8, %9, %cst_8 {dimension_numbers = #tpu.dot_dimension_numbers<[1], [0], [0], [1], [0, 0, 1, 1], [], []>} : vector<16x128xbf16>, vector<128x256xbf16>, vector<16x256xf32> -> vector<16x256xf32>
    %c0_9 = arith.constant 0 : index
    %c0_10 = arith.constant 0 : index
    %11 = vector.load %arg5[%c0_9, %c0_10] : memref<1x256xf32, #tpu.memory_space<vmem>>, vector<1x256xf32>
    %12 = vector.broadcast %11 : vector<1x256xf32> to vector<16x256xf32>
    %13 = arith.addf %10, %12 : vector<16x256xf32>
    %cst_11 = arith.constant 0.000000e+00 : f32
    %14 = vector.broadcast %cst_11 : f32 to vector<16x256xf32>
    %15 = arith.maximumf %13, %14 : vector<16x256xf32>
    %16 = arith.truncf %15 : vector<16x256xf32> to vector<16x256xbf16>
    %c0_12 = arith.constant 0 : index
    %c0_13 = arith.constant 0 : index
    %17 = vector.load %arg6[%c0_12, %c0_13] : memref<256x128xbf16, #tpu.memory_space<vmem>>, vector<256x128xbf16>
    %cst_14 = arith.constant dense<0.000000e+00> : vector<16x128xf32>
    %18 = tpu.matmul %16, %17, %cst_14 {dimension_numbers = #tpu.dot_dimension_numbers<[1], [0], [0], [1], [0, 0, 1, 1], [], []>} : vector<16x256xbf16>, vector<256x128xbf16>, vector<16x128xf32> -> vector<16x128xf32>
    %c0_15 = arith.constant 0 : index
    %c0_16 = arith.constant 0 : index
    %19 = vector.load %arg7[%c0_15, %c0_16] : memref<1x128xf32, #tpu.memory_space<vmem>>, vector<1x128xf32>
    %20 = vector.broadcast %19 : vector<1x128xf32> to vector<16x128xf32>
    %21 = arith.addf %18, %20 : vector<16x128xf32>
    %cst_17 = arith.constant 0.000000e+00 : f32
    %22 = vector.broadcast %cst_17 : f32 to vector<16x128xf32>
    %23 = arith.maximumf %21, %22 : vector<16x128xf32>
    %24 = arith.truncf %23 : vector<16x128xf32> to vector<16x128xbf16>
    %c0_18 = arith.constant 0 : index
    %c0_19 = arith.constant 0 : index
    %25 = vector.load %arg8[%c0_18, %c0_19] : memref<128x32xbf16, #tpu.memory_space<vmem>>, vector<128x32xbf16>
    %cst_20 = arith.constant dense<0.000000e+00> : vector<16x32xf32>
    %26 = tpu.matmul %24, %25, %cst_20 {dimension_numbers = #tpu.dot_dimension_numbers<[1], [0], [0], [1], [0, 0, 1, 1], [], []>} : vector<16x128xbf16>, vector<128x32xbf16>, vector<16x32xf32> -> vector<16x32xf32>
    %c0_21 = arith.constant 0 : index
    %c0_22 = arith.constant 0 : index
    %27 = vector.load %arg9[%c0_21, %c0_22] : memref<1x32xf32, #tpu.memory_space<vmem>>, vector<1x32xf32>
    %28 = vector.broadcast %27 : vector<1x32xf32> to vector<16x32xf32>
    %29 = arith.addf %26, %28 : vector<16x32xf32>
    %cst_23 = arith.constant 0.000000e+00 : f32
    %30 = vector.broadcast %cst_23 : f32 to vector<16x32xf32>
    %31 = arith.subf %30, %29 : vector<16x32xf32>
    %32 = math.exp %31 : vector<16x32xf32>
    %cst_24 = arith.constant 1.000000e+00 : f32
    %33 = vector.broadcast %cst_24 : f32 to vector<16x32xf32>
    %34 = arith.addf %33, %32 : vector<16x32xf32>
    %cst_25 = arith.constant 1.000000e+00 : f32
    %35 = vector.broadcast %cst_25 : f32 to vector<16x32xf32>
    %36 = arith.divf %35, %34 : vector<16x32xf32>
    %c0_26 = arith.constant 0 : index
    %c0_27 = arith.constant 0 : index
    %37 = vector.load %arg10[%c0_26, %c0_27] : memref<16x32xf32, #tpu.memory_space<vmem>>, vector<16x32xf32>
    tpu.vector_store %arg10[%c0_26, %c0_27], %36 {strides = array<i32>} : memref<16x32xf32, #tpu.memory_space<vmem>>, vector<16x32xf32>,
    return
  }
  func.func @transform_0(%arg0: i32) -> (i32, i32) {
    %c0_i32 = arith.constant 0 : i32
    %c0_i32_0 = arith.constant 0 : i32
    return %arg0, %c0_i32 : i32, i32
  }
  func.func @transform_1(%arg0: i32) -> (i32, i32) {
    %c0_i32 = arith.constant 0 : i32
    %c0_i32_0 = arith.constant 0 : i32
    %c0_i32_1 = arith.constant 0 : i32
    return %c0_i32, %c0_i32_0 : i32, i32
  }
  func.func @transform_2(%arg0: i32) -> (i32, i32) {
    %c0_i32 = arith.constant 0 : i32
    %c0_i32_0 = arith.constant 0 : i32
    %c0_i32_1 = arith.constant 0 : i32
    return %c0_i32, %c0_i32_0 : i32, i32
  }
  func.func @transform_3(%arg0: i32) -> (i32, i32) {
    %c0_i32 = arith.constant 0 : i32
    %c0_i32_0 = arith.constant 0 : i32
    %c0_i32_1 = arith.constant 0 : i32
    return %c0_i32, %c0_i32_0 : i32, i32
  }
  func.func @transform_4(%arg0: i32) -> (i32, i32) {
    %c0_i32 = arith.constant 0 : i32
    %c0_i32_0 = arith.constant 0 : i32
    %c0_i32_1 = arith.constant 0 : i32
    return %c0_i32, %c0_i32_0 : i32, i32
  }
  func.func @transform_5(%arg0: i32) -> (i32, i32) {
    %c0_i32 = arith.constant 0 : i32
    %c0_i32_0 = arith.constant 0 : i32
    %c0_i32_1 = arith.constant 0 : i32
    return %c0_i32, %c0_i32_0 : i32, i32
  }
  func.func @transform_6(%arg0: i32) -> (i32, i32) {
    %c0_i32 = arith.constant 0 : i32
    %c0_i32_0 = arith.constant 0 : i32
    %c0_i32_1 = arith.constant 0 : i32
    return %c0_i32, %c0_i32_0 : i32, i32
  }
  func.func @transform_7(%arg0: i32) -> (i32, i32) {
    %c0_i32 = arith.constant 0 : i32
    %c0_i32_0 = arith.constant 0 : i32
    %c0_i32_1 = arith.constant 0 : i32
    return %c0_i32, %c0_i32_0 : i32, i32
  }
  func.func @transform_8(%arg0: i32) -> (i32, i32) {
    %c0_i32 = arith.constant 0 : i32
    %c0_i32_0 = arith.constant 0 : i32
    %c0_i32_1 = arith.constant 0 : i32
    return %c0_i32, %c0_i32_0 : i32, i32
  }
  func.func @transform_9(%arg0: i32) -> (i32, i32) {
    %c0_i32 = arith.constant 0 : i32
    %c0_i32_0 = arith.constant 0 : i32
    return %arg0, %c0_i32 : i32, i32
  }
}

</mosaic_0001>

<llo_original>
// kernel: tpu_custom_call.1
$region0: #{tpu_custom_call.1}
  #allocation0 [shape = 'u32[]', space=smem, size = 0x4, offset = 0x4, fixed_abs, tag = 'smem constant byte address 0x4 - core index']
  #allocation1 [shape = 'u32[144,128]{1,0:T(1,128)}', space=vmem, size = 0x12000, scoped, tag = 'internal scratch']
  %s0 = inlined_call_operand.vmem [shape: bf16[16,64], index: 0, kind: input, shape index: {}]
  %s1 = inlined_call_operand.vmem [shape: bf16[64,128], index: 1, kind: input, shape index: {}]
  %s2 = inlined_call_operand.vmem [shape: f32[1,128], index: 2, kind: input, shape index: {}]
  %s3 = inlined_call_operand.hbm [shape: bf16[128,256], index: 3, kind: input, shape index: {}]
  %s4 = inlined_call_operand.vmem [shape: f32[1,256], index: 4, kind: input, shape index: {}]
  %s5 = inlined_call_operand.hbm [shape: bf16[256,128], index: 5, kind: input, shape index: {}]
  %s6 = inlined_call_operand.vmem [shape: f32[1,128], index: 6, kind: input, shape index: {}]
  %s7 = inlined_call_operand.vmem [shape: bf16[128,32], index: 7, kind: input, shape index: {}]
  %s8 = inlined_call_operand.vmem [shape: f32[1,32], index: 8, kind: input, shape index: {}]
  %s9 = inlined_call_operand.hbm [shape: f32[16,32], index: 9, kind: output, shape index: {}]
  %s10 = sld [smem:[#allocation0]]
  $region54: #{tpu_custom_call.1} parent=0
    _
  %s12 = ssub.s32 1, %s10
  %s13 = scalar_select 0, %s12, %s10
  $region1: #{tpu_custom_call.1} parent=0
    #allocation2 [shape = 'u8[65536]{0}', space=vmem, size = 0x10000, scoped, tag = 'input window, operand 3, single buffered']
    #allocation3 [shape = 's32[1]{0}', space=sflag, size = 0x4, scoped, tag = 'scoped memory for tpu_custom_call.1']
    #allocation4 [shape = 's32[1]{0}', space=sflag, size = 0x4, scoped, tag = 'scoped memory for tpu_custom_call.1']
    #allocation5 [shape = 'u8[65536]{0}', space=vmem, size = 0x10000, scoped, tag = 'input window, operand 5, single buffered']
    #allocation6 [shape = 's32[1]{0}', space=sflag, size = 0x4, scoped, tag = 'scoped memory for tpu_custom_call.1']
    #allocation7 [shape = 'u8[8192]{0}', space=vmem, size = 0x2000, scoped, tag = 'output window, operand 0, single buffered']
    %14 = vsyncpa [#allocation3], 0
    %15 = vsyncpa [#allocation6], 0
    %16 = vsyncpa [#allocation4], 0
    // Predicated region
    $region2: #{tpu_custom_call.1} parent=1 // pred_check
      _
    $region3: #{tpu_custom_call.1} parent=1 // pred_check_branch
      %18 = sbr.rel (0) target = $region5
    $region4: #{tpu_custom_call.1} parent=1 // pred_region
      _
    $region5: #{tpu_custom_call.1} parent=1 // pred_fallthru
      _
    // Predicated region
    $region6: #{tpu_custom_call.1} parent=1 // pred_check
      _
    $region7: #{tpu_custom_call.1} parent=1 // pred_check_branch
      %20 = sbr.rel (0) target = $region9
    $region8: #{tpu_custom_call.1} parent=1 // pred_region
      _
    $region9: #{tpu_custom_call.1} parent=1 // pred_fallthru
      _
    // Predicated region
    $region10: #{tpu_custom_call.1} parent=1 // pred_check
      _
    $region11: #{tpu_custom_call.1} parent=1 // pred_check_branch
      %22 = sbr.rel (0) target = $region13
    $region12: #{tpu_custom_call.1} parent=1 // pred_region
      _
    $region13: #{tpu_custom_call.1} parent=1 // pred_fallthru
      _
    // Predicated region
    $region14: #{tpu_custom_call.1} parent=1 // pred_check
      _
    $region15: #{tpu_custom_call.1} parent=1 // pred_check_branch
      %24 = sbr.rel (0) target = $region17
    $region16: #{tpu_custom_call.1} parent=1 // pred_region
      %s26 = ssub.s32 2048, 2048
      %27 = vsyncadd [#allocation3], %s26
      %s28 = sshll.u32 [#allocation2], 4
      %s29 = int_to_ptr.vmem [resolvable:$true] %s28
      %34 = dma.hbm_to_vmem [thread:$0]  %s3, 2048, %s29, [#allocation3], 128, 128, 8
    $region17: #{tpu_custom_call.1} parent=1 // pred_fallthru
      _
    // Predicated region
    $region18: #{tpu_custom_call.1} parent=1 // pred_check
      _
    $region19: #{tpu_custom_call.1} parent=1 // pred_check_branch
      %36 = sbr.rel (0) target = $region21
    $region20: #{tpu_custom_call.1} parent=1 // pred_region
      _
    $region21: #{tpu_custom_call.1} parent=1 // pred_fallthru
      _
    // Predicated region
    $region22: #{tpu_custom_call.1} parent=1 // pred_check
      _
    $region23: #{tpu_custom_call.1} parent=1 // pred_check_branch
      %38 = sbr.rel (0) target = $region25
    $region24: #{tpu_custom_call.1} parent=1 // pred_region
      %s40 = ssub.s32 2048, 2048
      %41 = vsyncadd [#allocation6], %s40
      %s42 = sshll.u32 [#allocation5], 4
      %s43 = int_to_ptr.vmem [resolvable:$true] %s42
      %48 = dma.hbm_to_vmem [thread:$0]  %s5, 2048, %s43, [#allocation6], 64, 64, 4
    $region25: #{tpu_custom_call.1} parent=1 // pred_fallthru
      _
    // Predicated region
    $region26: #{tpu_custom_call.1} parent=1 // pred_check
      _
    $region27: #{tpu_custom_call.1} parent=1 // pred_check_branch
      %50 = sbr.rel (0) target = $region29
    $region28: #{tpu_custom_call.1} parent=1 // pred_region
      _
    $region29: #{tpu_custom_call.1} parent=1 // pred_fallthru
      _
    // Predicated region
    $region30: #{tpu_custom_call.1} parent=1 // pred_check
      _
    $region31: #{tpu_custom_call.1} parent=1 // pred_check_branch
      %52 = sbr.rel (0) target = $region33
    $region32: #{tpu_custom_call.1} parent=1 // pred_region
      _
    $region33: #{tpu_custom_call.1} parent=1 // pred_fallthru
      _
    // Predicated region
    $region34: #{tpu_custom_call.1} parent=1 // pred_check
      _
    $region35: #{tpu_custom_call.1} parent=1 // pred_check_branch
      %54 = sbr.rel (0) target = $region37
    $region36: #{tpu_custom_call.1} parent=1 // pred_region
      _
    $region37: #{tpu_custom_call.1} parent=1 // pred_fallthru
      _
    // Predicated region
    $region38: #{tpu_custom_call.1} parent=1 // pred_check
      _
    $region39: #{tpu_custom_call.1} parent=1 // pred_check_branch
      %56 = sbr.rel (0) target = $region41
    $region40: #{tpu_custom_call.1} parent=1 // pred_region
      %57 = dma.done [#allocation3], 2048
    $region41: #{tpu_custom_call.1} parent=1 // pred_fallthru
      _
    // Predicated region
    $region42: #{tpu_custom_call.1} parent=1 // pred_check
      _
    $region43: #{tpu_custom_call.1} parent=1 // pred_check_branch
      %59 = sbr.rel (0) target = $region45
    $region44: #{tpu_custom_call.1} parent=1 // pred_region
      %60 = dma.done [#allocation6], 2048
    $region45: #{tpu_custom_call.1} parent=1 // pred_fallthru
      _
    %v62 = vld [vmem:[%s0] sm:$0xf]
    %v63 = vld [vmem:[%s0 + $0x4] sm:$0xf]
    %v64 = vld [vmem:[%s1] sm:$0xf]
    %v65 = vld [vmem:[%s1 + $0x4] sm:$0xf]
    %v66 = vld [vmem:[%s1 + $0x8] sm:$0xf]
    %v67 = vld [vmem:[%s1 + $0xc] sm:$0xf]
    %v68 = vld [vmem:[%s1 + $0x10] sm:$0xf]
    %v69 = vld [vmem:[%s1 + $0x14] sm:$0xf]
    %v70 = vld [vmem:[%s1 + $0x18] sm:$0xf]
    %v71 = vld [vmem:[%s1 + $0x1c] sm:$0xf]
    %v72 = vld [vmem:[%s2] sm:$0x1]
    %v74 = vlaneseq
    %v75 = vshrl.u32 %v74, 7
    %v76 = vsub.s32 0, %v75
    %v77 = vrot.slane %v72, %v76
    %v81 = vunpack.c.l.b16 %v62
    %v82 = vunpack.c.l.b16 %v63
    %v83 = vpack.c.b16 %v82, %v81
    %v92 = vunpack.c.l.b16 %v64
    %v93 = vunpack.c.l.b16 %v65
    %v94 = vunpack.c.l.b16 %v66
    %v95 = vunpack.c.l.b16 %v67
    %v96 = vunpack.c.l.b16 %v68
    %v97 = vunpack.c.l.b16 %v69
    %v98 = vunpack.c.l.b16 %v70
    %v99 = vunpack.c.l.b16 %v71
    %v100 = vpack.c.b16 %v93, %v92
    %v101 = vpack.c.b16 %v95, %v94
    %v102 = vpack.c.b16 %v97, %v96
    %v103 = vpack.c.b16 %v99, %v98
    %vm108 = vcmask 523264
    %v110 = vsel %vm108, %v83, 0
    %112 = vmatprep.subr.bf16.mxu0 0
    %113 = vmatpush1.bf16.msra.mxu0 %v100
    %114 = vmatprep.subr.bf16.mxu0 0
    %115 = vmatpush1.bf16.msra.mxu0 %v101
    %116 = vmatprep.subr.bf16.mxu0 0
    %117 = vmatpush1.bf16.msra.mxu0 %v102
    %118 = vmatprep.subr.bf16.mxu0 0
    %119 = vmatpush1.bf16.msra.mxu0 %v103
    %120 = vmatprep.subr.bf16.mxu0 0
    %121 = vmatpush1.bf16.msra.mxu0 0
    %122 = vmatprep.subr.bf16.mxu0 0
    %123 = vmatpush1.bf16.msra.mxu0 0
    %124 = vmatprep.subr.bf16.mxu0 0
    %125 = vmatpush1.bf16.msra.mxu0 0
    %126 = vmatprep.subr.bf16.mxu0 0
    %127 = vmatpush1.bf16.msra.mxu0 0
    %128 = vmatprep.subr.bf16.mxu0 0
    %129 = vmatpush1.bf16.msra.mxu0 0
    %130 = vmatprep.subr.bf16.mxu0 0
    %131 = vmatpush1.bf16.msra.mxu0 0
    %132 = vmatprep.subr.bf16.mxu0 0
    %133 = vmatpush1.bf16.msra.mxu0 0
    %134 = vmatprep.subr.bf16.mxu0 0
    %135 = vmatpush1.bf16.msra.mxu0 0
    %136 = vmatprep.subr.bf16.mxu0 0
    %137 = vmatpush1.bf16.msra.mxu0 0
    %138 = vmatprep.subr.bf16.mxu0 0
    %139 = vmatpush1.bf16.msra.mxu0 0
    %140 = vmatprep.subr.bf16.mxu0 0
    %141 = vmatpush1.bf16.msra.mxu0 0
    %142 = vmatprep.subr.bf16.mxu0 0
    %143 = vmatpush1.bf16.msra.mxu0 0
    %144 = vmatprep.mubr.bf16.mxu0 0
    %145 = vmatmul.mubr.bf16.gmra.mrb[0].mxu0 %v110
    %v146 = vpop.f32.mrb[0].mxu0
    %v147 = vadd.f32 %v77, %v146
    %v148 = vpop.f32.mrb[0].mxu0
    %v149 = vpop.f32.mrb[0].mxu0
    %v150 = vadd.f32 %v77, %v149
    %v151 = vpop.f32.mrb[0].mxu0
    %152 = vdwg.mxu0
    %v153 = vmax.f32 %v147, 0.0
    %v154 = vmax.f32 %v150, 0.0
    %v155 = vpack.c.bf16 %v154, %v153
    %v156 = vld [vmem:[#allocation2] sm:$0xff]
    %v157 = vld [vmem:[#allocation2 + $0x8] sm:$0xff]
    %v158 = vld [vmem:[#allocation2 + $0x10] sm:$0xff]
    %v159 = vld [vmem:[#allocation2 + $0x18] sm:$0xff]
    %v160 = vld [vmem:[#allocation2 + $0x20] sm:$0xff]
    %v161 = vld [vmem:[#allocation2 + $0x28] sm:$0xff]
    %v162 = vld [vmem:[#allocation2 + $0x30] sm:$0xff]
    %v163 = vld [vmem:[#allocation2 + $0x38] sm:$0xff]
    %v164 = vld [vmem:[#allocation2 + $0x40] sm:$0xff]
    %v165 = vld [vmem:[#allocation2 + $0x48] sm:$0xff]
    %v166 = vld [vmem:[#allocation2 + $0x50] sm:$0xff]
    %v167 = vld [vmem:[#allocation2 + $0x58] sm:$0xff]
    %v168 = vld [vmem:[#allocation2 + $0x60] sm:$0xff]
    %v169 = vld [vmem:[#allocation2 + $0x68] sm:$0xff]
    %v170 = vld [vmem:[#allocation2 + $0x70] sm:$0xff]
    %v171 = vld [vmem:[#allocation2 + $0x78] sm:$0xff]
    %v172 = vld [vmem:[%s4] sm:$0x3]
    %v174 = vlaneseq
    %v175 = vshrl.u32 %v174, 7
    %v176 = vsub.s32 0, %v175
    %v177 = vrot.slane %v172, %v176
    %v178 = vlaneseq
    %v179 = vshrl.u32 %v178, 7
    %v180 = vsub.s32 1, %v179
    %v181 = vrot.slane %v172, %v180
    %v200 = vunpack.c.l.b16 %v156
    %v201 = vunpack.c.h.b16 %v156
    %v202 = vunpack.c.l.b16 %v157
    %v203 = vunpack.c.h.b16 %v157
    %v204 = vunpack.c.l.b16 %v158
    %v205 = vunpack.c.h.b16 %v158
    %v206 = vunpack.c.l.b16 %v159
    %v207 = vunpack.c.h.b16 %v159
    %v208 = vunpack.c.l.b16 %v160
    %v209 = vunpack.c.h.b16 %v160
    %v210 = vunpack.c.l.b16 %v161
    %v211 = vunpack.c.h.b16 %v161
    %v212 = vunpack.c.l.b16 %v162
    %v213 = vunpack.c.h.b16 %v162
    %v214 = vunpack.c.l.b16 %v163
    %v215 = vunpack.c.h.b16 %v163
    %v216 = vunpack.c.l.b16 %v164
    %v217 = vunpack.c.h.b16 %v164
    %v218 = vunpack.c.l.b16 %v165
    %v219 = vunpack.c.h.b16 %v165
    %v220 = vunpack.c.l.b16 %v166
    %v221 = vunpack.c.h.b16 %v166
    %v222 = vunpack.c.l.b16 %v167
    %v223 = vunpack.c.h.b16 %v167
    %v224 = vunpack.c.l.b16 %v168
    %v225 = vunpack.c.h.b16 %v168
    %v226 = vunpack.c.l.b16 %v169
    %v227 = vunpack.c.h.b16 %v169
    %v228 = vunpack.c.l.b16 %v170
    %v229 = vunpack.c.h.b16 %v170
    %v230 = vunpack.c.l.b16 %v171
    %v231 = vunpack.c.h.b16 %v171
    %v232 = vpack.c.b16 %v202, %v200
    %v233 = vpack.c.b16 %v203, %v201
    %v234 = vpack.c.b16 %v206, %v204
    %v235 = vpack.c.b16 %v207, %v205
    %v236 = vpack.c.b16 %v210, %v208
    %v237 = vpack.c.b16 %v211, %v209
    %v238 = vpack.c.b16 %v214, %v212
    %v239 = vpack.c.b16 %v215, %v213
    %v240 = vpack.c.b16 %v218, %v216
    %v241 = vpack.c.b16 %v219, %v217
    %v242 = vpack.c.b16 %v222, %v220
    %v243 = vpack.c.b16 %v223, %v221
    %v244 = vpack.c.b16 %v226, %v224
    %v245 = vpack.c.b16 %v227, %v225
    %v246 = vpack.c.b16 %v230, %v228
    %v247 = vpack.c.b16 %v231, %v229
    %264 = vmatprep.subr.bf16.mxu0 %v233
    %265 = vmatpush1.bf16.msra.mxu0 %v232
    %266 = vmatprep.subr.bf16.mxu0 %v235
    %267 = vmatpush1.bf16.msra.mxu0 %v234
    %268 = vmatprep.subr.bf16.mxu0 %v237
    %269 = vmatpush1.bf16.msra.mxu0 %v236
    %270 = vmatprep.subr.bf16.mxu0 %v239
    %271 = vmatpush1.bf16.msra.mxu0 %v238
    %272 = vmatprep.subr.bf16.mxu0 %v241
    %273 = vmatpush1.bf16.msra.mxu0 %v240
    %274 = vmatprep.subr.bf16.mxu0 %v243
    %275 = vmatpush1.bf16.msra.mxu0 %v242
    %276 = vmatprep.subr.bf16.mxu0 %v245
    %277 = vmatpush1.bf16.msra.mxu0 %v244
    %278 = vmatprep.subr.bf16.mxu0 %v247
    %279 = vmatpush1.bf16.msra.mxu0 %v246
    %280 = vmatprep.subr.bf16.mxu0 0
    %281 = vmatpush1.bf16.msra.mxu0 0
    %282 = vmatprep.subr.bf16.mxu0 0
    %283 = vmatpush1.bf16.msra.mxu0 0
    %284 = vmatprep.subr.bf16.mxu0 0
    %285 = vmatpush1.bf16.msra.mxu0 0
    %286 = vmatprep.subr.bf16.mxu0 0
    %287 = vmatpush1.bf16.msra.mxu0 0
    %288 = vmatprep.subr.bf16.mxu0 0
    %289 = vmatpush1.bf16.msra.mxu0 0
    %290 = vmatprep.subr.bf16.mxu0 0
    %291 = vmatpush1.bf16.msra.mxu0 0
    %292 = vmatprep.subr.bf16.mxu0 0
    %293 = vmatpush1.bf16.msra.mxu0 0
    %294 = vmatprep.subr.bf16.mxu0 0
    %295 = vmatpush1.bf16.msra.mxu0 0
    %296 = vmatprep.mubr.bf16.mxu0 0
    %297 = vmatmul.mubr.bf16.gmra.mrb[0].mxu0 %v155
    %v298 = vpop.f32.mrb[0].mxu0
    %v299 = vadd.f32 %v177, %v298
    %v300 = vpop.f32.mrb[0].mxu0
    %v301 = vadd.f32 %v181, %v300
    %v302 = vpop.f32.mrb[0].mxu0
    %v303 = vadd.f32 %v177, %v302
    %v304 = vpop.f32.mrb[0].mxu0
    %v305 = vadd.f32 %v181, %v304
    %306 = vdwg.mxu0
    %v307 = vmax.f32 %v299, 0.0
    %v308 = vmax.f32 %v301, 0.0
    %v309 = vmax.f32 %v303, 0.0
    %v310 = vmax.f32 %v305, 0.0
    %v311 = vpack.c.bf16 %v309, %v307
    %v312 = vpack.c.bf16 %v310, %v308
    %v313 = vld [vmem:[#allocation5] sm:$0xf]
    %v314 = vld [vmem:[#allocation5 + $0x4] sm:$0xf]
    %v315 = vld [vmem:[#allocation5 + $0x8] sm:$0xf]
    %v316 = vld [vmem:[#allocation5 + $0xc] sm:$0xf]
    %v317 = vld [vmem:[#allocation5 + $0x10] sm:$0xf]
    %v318 = vld [vmem:[#allocation5 + $0x14] sm:$0xf]
    %v319 = vld [vmem:[#allocation5 + $0x18] sm:$0xf]
    %v320 = vld [vmem:[#allocation5 + $0x1c] sm:$0xf]
    %v321 = vld [vmem:[#allocation5 + $0x20] sm:$0xf]
    %v322 = vld [vmem:[#allocation5 + $0x24] sm:$0xf]
    %v323 = vld [vmem:[#allocation5 + $0x28] sm:$0xf]
    %v324 = vld [vmem:[#allocation5 + $0x2c] sm:$0xf]
    %v325 = vld [vmem:[#allocation5 + $0x30] sm:$0xf]
    %v326 = vld [vmem:[#allocation5 + $0x34] sm:$0xf]
    %v327 = vld [vmem:[#allocation5 + $0x38] sm:$0xf]
    %v328 = vld [vmem:[#allocation5 + $0x3c] sm:$0xf]
    %v329 = vld [vmem:[#allocation5 + $0x40] sm:$0xf]
    %v330 = vld [vmem:[#allocation5 + $0x44] sm:$0xf]
    %v331 = vld [vmem:[#allocation5 + $0x48] sm:$0xf]
    %v332 = vld [vmem:[#allocation5 + $0x4c] sm:$0xf]
    %v333 = vld [vmem:[#allocation5 + $0x50] sm:$0xf]
    %v334 = vld [vmem:[#allocation5 + $0x54] sm:$0xf]
    %v335 = vld [vmem:[#allocation5 + $0x58] sm:$0xf]
    %v336 = vld [vmem:[#allocation5 + $0x5c] sm:$0xf]
    %v337 = vld [vmem:[#allocation5 + $0x60] sm:$0xf]
    %v338 = vld [vmem:[#allocation5 + $0x64] sm:$0xf]
    %v339 = vld [vmem:[#allocation5 + $0x68] sm:$0xf]
    %v340 = vld [vmem:[#allocation5 + $0x6c] sm:$0xf]
    %v341 = vld [vmem:[#allocation5 + $0x70] sm:$0xf]
    %v342 = vld [vmem:[#allocation5 + $0x74] sm:$0xf]
    %v343 = vld [vmem:[#allocation5 + $0x78] sm:$0xf]
    %v344 = vld [vmem:[#allocation5 + $0x7c] sm:$0xf]
    %v345 = vld [vmem:[%s6] sm:$0x1]
    %v347 = vlaneseq
    %v348 = vshrl.u32 %v347, 7
    %v349 = vsub.s32 0, %v348
    %v350 = vrot.slane %v345, %v349
    %v384 = vunpack.c.l.b16 %v313
    %v385 = vunpack.c.l.b16 %v314
    %v386 = vunpack.c.l.b16 %v315
    %v387 = vunpack.c.l.b16 %v316
    %v388 = vunpack.c.l.b16 %v317
    %v389 = vunpack.c.l.b16 %v318
    %v390 = vunpack.c.l.b16 %v319
    %v391 = vunpack.c.l.b16 %v320
    %v392 = vunpack.c.l.b16 %v321
    %v393 = vunpack.c.l.b16 %v322
    %v394 = vunpack.c.l.b16 %v323
    %v395 = vunpack.c.l.b16 %v324
    %v396 = vunpack.c.l.b16 %v325
    %v397 = vunpack.c.l.b16 %v326
    %v398 = vunpack.c.l.b16 %v327
    %v399 = vunpack.c.l.b16 %v328
    %v400 = vunpack.c.l.b16 %v329
    %v401 = vunpack.c.l.b16 %v330
    %v402 = vunpack.c.l.b16 %v331
    %v403 = vunpack.c.l.b16 %v332
    %v404 = vunpack.c.l.b16 %v333
    %v405 = vunpack.c.l.b16 %v334
    %v406 = vunpack.c.l.b16 %v335
    %v407 = vunpack.c.l.b16 %v336
    %v408 = vunpack.c.l.b16 %v337
    %v409 = vunpack.c.l.b16 %v338
    %v410 = vunpack.c.l.b16 %v339
    %v411 = vunpack.c.l.b16 %v340
    %v412 = vunpack.c.l.b16 %v341
    %v413 = vunpack.c.l.b16 %v342
    %v414 = vunpack.c.l.b16 %v343
    %v415 = vunpack.c.l.b16 %v344
    %v416 = vpack.c.b16 %v385, %v384
    %v417 = vpack.c.b16 %v387, %v386
    %v418 = vpack.c.b16 %v389, %v388
    %v419 = vpack.c.b16 %v391, %v390
    %v420 = vpack.c.b16 %v393, %v392
    %v421 = vpack.c.b16 %v395, %v394
    %v422 = vpack.c.b16 %v397, %v396
    %v423 = vpack.c.b16 %v399, %v398
    %v424 = vpack.c.b16 %v401, %v400
    %v425 = vpack.c.b16 %v403, %v402
    %v426 = vpack.c.b16 %v405, %v404
    %v427 = vpack.c.b16 %v407, %v406
    %v428 = vpack.c.b16 %v409, %v408
    %v429 = vpack.c.b16 %v411, %v410
    %v430 = vpack.c.b16 %v413, %v412
    %v431 = vpack.c.b16 %v415, %v414
    %448 = vmatprep.subr.bf16.mxu0 0
    %449 = vmatpush1.bf16.msra.mxu0 %v416
    %450 = vmatprep.subr.bf16.mxu0 0
    %451 = vmatpush1.bf16.msra.mxu0 %v417
    %452 = vmatprep.subr.bf16.mxu0 0
    %453 = vmatpush1.bf16.msra.mxu0 %v418
    %454 = vmatprep.subr.bf16.mxu0 0
    %455 = vmatpush1.bf16.msra.mxu0 %v419
    %456 = vmatprep.subr.bf16.mxu0 0
    %457 = vmatpush1.bf16.msra.mxu0 %v420
    %458 = vmatprep.subr.bf16.mxu0 0
    %459 = vmatpush1.bf16.msra.mxu0 %v421
    %460 = vmatprep.subr.bf16.mxu0 0
    %461 = vmatpush1.bf16.msra.mxu0 %v422
    %462 = vmatprep.subr.bf16.mxu0 0
    %463 = vmatpush1.bf16.msra.mxu0 %v423
    %464 = vmatprep.subr.bf16.mxu0 0
    %465 = vmatpush1.bf16.msra.mxu0 %v424
    %466 = vmatprep.subr.bf16.mxu0 0
    %467 = vmatpush1.bf16.msra.mxu0 %v425
    %468 = vmatprep.subr.bf16.mxu0 0
    %469 = vmatpush1.bf16.msra.mxu0 %v426
    %470 = vmatprep.subr.bf16.mxu0 0
    %471 = vmatpush1.bf16.msra.mxu0 %v427
    %472 = vmatprep.subr.bf16.mxu0 0
    %473 = vmatpush1.bf16.msra.mxu0 %v428
    %474 = vmatprep.subr.bf16.mxu0 0
    %475 = vmatpush1.bf16.msra.mxu0 %v429
    %476 = vmatprep.subr.bf16.mxu0 0
    %477 = vmatpush1.bf16.msra.mxu0 %v430
    %478 = vmatprep.subr.bf16.mxu0 0
    %479 = vmatpush1.bf16.msra.mxu0 %v431
    %480 = vmatprep.mubr.bf16.mxu0 %v312
    %481 = vmatmul.mubr.bf16.gmra.mrb[0].mxu0 %v311
    %v482 = vpop.f32.mrb[0].mxu0
    %v483 = vadd.f32 %v350, %v482
    %v484 = vpop.f32.mrb[0].mxu0
    %v485 = vpop.f32.mrb[0].mxu0
    %v486 = vadd.f32 %v350, %v485
    %v487 = vpop.f32.mrb[0].mxu0
    %488 = vdwg.mxu0
    %v489 = vmax.f32 %v483, 0.0
    %v490 = vmax.f32 %v486, 0.0
    %v491 = vpack.c.bf16 %v490, %v489
    %v492 = vld [vmem:[%s7] sm:$0xf]
    %v493 = vld [vmem:[%s7 + $0x4] sm:$0xf]
    %v494 = vld [vmem:[%s7 + $0x8] sm:$0xf]
    %v495 = vld [vmem:[%s7 + $0xc] sm:$0xf]
    %v496 = vld [vmem:[%s7 + $0x10] sm:$0xf]
    %v497 = vld [vmem:[%s7 + $0x14] sm:$0xf]
    %v498 = vld [vmem:[%s7 + $0x18] sm:$0xf]
    %v499 = vld [vmem:[%s7 + $0x1c] sm:$0xf]
    %v500 = vld [vmem:[%s7 + $0x20] sm:$0xf]
    %v501 = vld [vmem:[%s7 + $0x24] sm:$0xf]
    %v502 = vld [vmem:[%s7 + $0x28] sm:$0xf]
    %v503 = vld [vmem:[%s7 + $0x2c] sm:$0xf]
    %v504 = vld [vmem:[%s7 + $0x30] sm:$0xf]
    %v505 = vld [vmem:[%s7 + $0x34] sm:$0xf]
    %v506 = vld [vmem:[%s7 + $0x38] sm:$0xf]
    %v507 = vld [vmem:[%s7 + $0x3c] sm:$0xf]
    %v508 = vld [vmem:[%s8] sm:$0x1]
    %v510 = vlaneseq
    %v511 = vshrl.u32 %v510, 7
    %v512 = vsub.s32 0, %v511
    %v513 = vrot.slane %v508, %v512
    %v531 = vunpack.c.l.b16 %v492
    %v532 = vunpack.c.l.b16 %v493
    %v533 = vunpack.c.l.b16 %v494
    %v534 = vunpack.c.l.b16 %v495
    %v535 = vunpack.c.l.b16 %v496
    %v536 = vunpack.c.l.b16 %v497
    %v537 = vunpack.c.l.b16 %v498
    %v538 = vunpack.c.l.b16 %v499
    %v539 = vunpack.c.l.b16 %v500
    %v540 = vunpack.c.l.b16 %v501
    %v541 = vunpack.c.l.b16 %v502
    %v542 = vunpack.c.l.b16 %v503
    %v543 = vunpack.c.l.b16 %v504
    %v544 = vunpack.c.l.b16 %v505
    %v545 = vunpack.c.l.b16 %v506
    %v546 = vunpack.c.l.b16 %v507
    %v547 = vpack.c.b16 %v532, %v531
    %v548 = vpack.c.b16 %v534, %v533
    %v549 = vpack.c.b16 %v536, %v535
    %v550 = vpack.c.b16 %v538, %v537
    %v551 = vpack.c.b16 %v540, %v539
    %v552 = vpack.c.b16 %v542, %v541
    %v553 = vpack.c.b16 %v544, %v543
    %v554 = vpack.c.b16 %v546, %v545
    %563 = vmatprep.subr.bf16.mxu0 0
    %564 = vmatpush1.bf16.msra.mxu0 %v547
    %565 = vmatprep.subr.bf16.mxu0 0
    %566 = vmatpush1.bf16.msra.mxu0 %v548
    %567 = vmatprep.subr.bf16.mxu0 0
    %568 = vmatpush1.bf16.msra.mxu0 %v549
    %569 = vmatprep.subr.bf16.mxu0 0
    %570 = vmatpush1.bf16.msra.mxu0 %v550
    %571 = vmatprep.subr.bf16.mxu0 0
    %572 = vmatpush1.bf16.msra.mxu0 %v551
    %573 = vmatprep.subr.bf16.mxu0 0
    %574 = vmatpush1.bf16.msra.mxu0 %v552
    %575 = vmatprep.subr.bf16.mxu0 0
    %576 = vmatpush1.bf16.msra.mxu0 %v553
    %577 = vmatprep.subr.bf16.mxu0 0
    %578 = vmatpush1.bf16.msra.mxu0 %v554
    %579 = vmatprep.subr.bf16.mxu0 0
    %580 = vmatpush1.bf16.msra.mxu0 0
    %581 = vmatprep.subr.bf16.mxu0 0
    %582 = vmatpush1.bf16.msra.mxu0 0
    %583 = vmatprep.subr.bf16.mxu0 0
    %584 = vmatpush1.bf16.msra.mxu0 0
    %585 = vmatprep.subr.bf16.mxu0 0
    %586 = vmatpush1.bf16.msra.mxu0 0
    %587 = vmatprep.subr.bf16.mxu0 0
    %588 = vmatpush1.bf16.msra.mxu0 0
    %589 = vmatprep.subr.bf16.mxu0 0
    %590 = vmatpush1.bf16.msra.mxu0 0
    %591 = vmatprep.subr.bf16.mxu0 0
    %592 = vmatpush1.bf16.msra.mxu0 0
    %593 = vmatprep.subr.bf16.mxu0 0
    %594 = vmatpush1.bf16.msra.mxu0 0
    %595 = vmatprep.mubr.bf16.mxu0 0
    %596 = vmatmul.mubr.bf16.gmra.mrb[0].mxu0 %v491
    %v597 = vpop.f32.mrb[0].mxu0
    %v598 = vadd.f32 %v513, %v597
    %v599 = vpop.f32.mrb[0].mxu0
    %v600 = vpop.f32.mrb[0].mxu0
    %v601 = vadd.f32 %v513, %v600
    %v602 = vpop.f32.mrb[0].mxu0
    %603 = vdwg.mxu0
    %v604 = vsub.f32 0.0, %v598
    %v605 = vsub.f32 0.0, %v601
    %v606 = vmul.f32 %v604, 1.442695
    %v607 = vpow.pop %v606
    %v608 = vmul.f32 %v605, 1.442695
    %v609 = vpow.pop %v608
    %v610 = vadd.f32 %v607, 1.0
    %v611 = vadd.f32 %v609, 1.0
    %v612 = vrcp.pop %v610
    %v613 = vmul.f32 1.0, %v612
    %v614 = vrcp.pop %v611
    %v615 = vmul.f32 1.0, %v614
    %vm616 = vcmask 261120
    %617 = vst.msk [vmem:[#allocation7] sm:$0xff] %vm616, %v613
    %618 = vst.msk [vmem:[#allocation7 + $0x8] sm:$0xff] %vm616, %v615
    // Predicated region
    $region46: #{tpu_custom_call.1} parent=1 // pred_check
      _
    $region47: #{tpu_custom_call.1} parent=1 // pred_check_branch
      %620 = sbr.rel (0) target = $region49
    $region48: #{tpu_custom_call.1} parent=1 // pred_region
      %s622 = ssub.s32 256, 256
      %623 = vsyncadd [#allocation4], %s622
      %s624 = sshll.u32 [#allocation7], 4
      %s625 = int_to_ptr.vmem [resolvable:$true] %s624
      %630 = dma.vmem_to_hbm [thread:$0]  %s625, 256, %s9, [#allocation4], 128, 128, 8
    $region49: #{tpu_custom_call.1} parent=1 // pred_fallthru
      _
    // Predicated region
    $region50: #{tpu_custom_call.1} parent=1 // pred_check
      _
    $region51: #{tpu_custom_call.1} parent=1 // pred_check_branch
      %632 = sbr.rel (0) target = $region53
    $region52: #{tpu_custom_call.1} parent=1 // pred_region
      %633 = dma.done [#allocation4], 256
    $region53: #{tpu_custom_call.1} parent=1 // pred_fallthru
      _
    %634 = vsyncpa [#allocation3], 1
    %635 = vsyncpa [#allocation6], 1
    %636 = vsyncpa [#allocation4], 1

</llo_original>
